<compile_context>
chip_gen: v6e
topology: v6e:2x2x1
jax: 0.10.0
libtpu: 0.0.40
codegen_flags: <defaults>
</compile_context>

<pallas_src>
import functools

import jax
import jax.numpy as jnp
from jax import lax
from jax.experimental import pallas as pl
from jax.experimental.pallas import tpu as pltpu


MIN_CHUNK = 1024  # rows processed per inner step; bounds live activation VMEM


def _round_up(a, m):
    return ((a + m - 1) // m) * m


def mlp_kernel(x_ref, w1_ref, b1_ref, w2_ref, b2_ref, w3_ref, b3_ref, o_ref, *, chunk):
    """Processes one (tb, 3) batch tile, `chunk` rows at a time.

    Batch lives on the sublane axis; feature dims (3 / 32) live on lanes.
    Weights are (in, out); biases are (1, out) rows (sublane broadcast).
    """
    # Hoist the tiny resident weights out of the chunk loop (loaded once per tile).
    w1 = w1_ref[...]   # (3, 32)
    b1 = b1_ref[...]   # (1, 32)
    w2 = w2_ref[...]   # (32, 32)
    b2 = b2_ref[...]   # (1, 32)
    w3 = w3_ref[...]   # (32, 3)
    b3 = b3_ref[...]   # (1, 3)

    n_chunks = x_ref.shape[0] // chunk  # static; tb is always a multiple of chunk

    def body(c, carry):
        r0 = pl.multiple_of(c * chunk, chunk)
        x = x_ref[pl.ds(r0, chunk), :]                    # (chunk, 3)

        # Layer 1: contraction depth is only 3 -> unroll as 3 outer-product FMAs on
        # the VPU (a full MXU pass would be <2% utilized and still pay push/pop latency).
        h1 = (x[:, 0:1] * w1[0:1, :]
              + x[:, 1:2] * w1[1:2, :]
              + x[:, 2:3] * w1[2:3, :]
              + b1)                                       # (chunk, 32)
        h1 = jnp.maximum(h1, 0.0)                         # relu1

        # Layer 2: 32x32 contraction on the MXU.
        h2 = jnp.dot(h1, w2, preferred_element_type=jnp.float32) + b2
        h2 = jnp.maximum(h2, 0.0)                         # (chunk, 32) relu2

        # Layer 3: (chunk, 32) @ (32, 3) -> (chunk, 3), written straight to the block.
        y = jnp.dot(h2, w3, preferred_element_type=jnp.float32) + b3
        o_ref[pl.ds(r0, chunk), :] = y.astype(o_ref.dtype)
        return carry

    lax.fori_loop(0, n_chunks, body, 0)


@functools.partial(jax.jit, static_argnames=("tile_b",))
def simple_model_forward(x, params, *, tile_b=8192):
    """x: (B, 3) float32 (PyTorch layout). Returns (B, 3) float32. No wrapper copies."""
    assert tile_b % MIN_CHUNK == 0
    B = x.shape[0]

    if B <= MIN_CHUNK:
        # Single small tile (still a multiple of 8 sublanes); one chunk.
        tb = _round_up(max(B, 8), 8)
    else:
        # Aim for >=4 batch tiles so the "parallel" axis feeds both v7x TensorCores
        # and double-buffering has steps to pipeline; cap at tile_b to bound VMEM.
        tb = min(tile_b, _round_up(pl.cdiv(B, 4), MIN_CHUNK))
    chunk = min(MIN_CHUNK, tb)
    grid = (pl.cdiv(B, tb),)

    # (tb, 3) blocks pad 3 -> 128 lanes in VMEM: ~tb*512 B per buffer, double-buffered,
    # for both input and output.  Size the scoped-VMEM limit accordingly (v5e defaults
    # to only 16 MiB), but never request more than v7x's 64 MiB physical VMEM.
    io_vmem = 2 * 2 * tb * 128 * 4                 # 2 arrays x 2 buffers x padded tile
    vmem_limit = min(64 << 20, max(32 << 20, io_vmem + (12 << 20)))

    # Weights/biases: constant index_map -> DMA'd once, resident across all grid steps.
    def resident(shape):
        return pl.BlockSpec(shape, lambda i: (0, 0))

    out = pl.pallas_call(
        functools.partial(mlp_kernel, chunk=chunk),
        out_shape=jax.ShapeDtypeStruct((B, 3), jnp.float32),
        grid=grid,
        in_specs=[
            pl.BlockSpec((tb, 3), lambda i: (i, 0)),  # x tile, pipelined over batch
            resident((3, 32)),                        # w1 (in, out)
            resident((1, 32)),                        # b1
            resident((32, 32)),                       # w2
            resident((1, 32)),                        # b2
            resident((32, 3)),                        # w3
            resident((1, 3)),                         # b3
        ],
        out_specs=pl.BlockSpec((tb, 3), lambda i: (i, 0)),
        compiler_params=pltpu.CompilerParams(
            dimension_semantics=("parallel",),        # shards tiles across v7x TCs
            vmem_limit_bytes=vmem_limit,
        ),
    )(
        x,
        params["w1t"], params["b1"],
        params["w2t"], params["b2"],
        params["w3t"], params["b3"],
    )
    return out


def init_params(key):
    """Deterministic init mimicking PyTorch nn.Linear default:
    U(-1/sqrt(fan_in), 1/sqrt(fan_in)) for both weight and bias.

    Weights are stored pre-transposed to (in, out) so the kernel computes x @ W with no
    transposes in the kernel or wrapper; biases are stored as (1, out) rows.
    """
    def linear(key, fan_in, fan_out):
        kw, kb = jax.random.split(key)
        bound = 1.0 / jnp.sqrt(float(fan_in))
        w = jax.random.uniform(kw, (fan_out, fan_in), jnp.float32, -bound, bound)
        b = jax.random.uniform(kb, (fan_out,), jnp.float32, -bound, bound)
        return w, b

    k1, k2, k3 = jax.random.split(key, 3)
    w1, b1 = linear(k1, 3, 32)
    w2, b2 = linear(k2, 32, 32)
    w3, b3 = linear(k3, 32, 3)
    return {
        "w1t": w1.T, "b1": b1[None, :],
        "w2t": w2.T, "b2": b2[None, :],
        "w3t": w3.T, "b3": b3[None, :],
    }


def reference_forward(x, params):
    """Pure-JAX reference in the standard (B, features) orientation."""
    h1 = jnp.maximum(x @ params["w1t"] + params["b1"], 0.0)
    h2 = jnp.maximum(h1 @ params["w2t"] + params["b2"], 0.0)
    return h2 @ params["w3t"] + params["b3"]


if __name__ == "__main__":
    key = jax.random.PRNGKey(0)
    k_param, k_x1, k_x2 = jax.random.split(key, 3)
    params = init_params(k_param)

    # Small shape consistent with the module (batch=8, in_features=3): single tiny tile.
    x_small = jax.random.normal(k_x1, (8, 3), jnp.float32)
    out_small = jax.block_until_ready(simple_model_forward(x_small, params))
    ref_small = reference_forward(x_small, params)
    assert out_small.shape == (8, 3)
    assert jnp.allclose(out_small, ref_small, atol=1e-4, rtol=1e-4), \
        "mismatch vs pure-JAX reference (small batch)"

    # Larger, non-multiple batch exercises the multi-tile pipelined grid (3 tiles of 2048)
    # plus the masked ragged final block.
    x_big = jax.random.normal(k_x2, (4097, 3), jnp.float32)
    out_big = jax.block_until_ready(simple_model_forward(x_big, params))
    ref_big = reference_forward(x_big, params)
    assert out_big.shape == (4097, 3)
    assert jnp.allclose(out_big, ref_big, atol=1e-4, rtol=1e-4), \
        "mismatch vs pure-JAX reference (large ragged batch)"

    print("KERNEL_OK")
</pallas_src>

<mosaic_0001>
module attributes {stable_mosaic.version = 11 : i64} {
  func.func @mlp_kernel(%arg0: i32, %arg1: memref<8x3xf32, #tpu.memory_space<vmem>>, %arg2: memref<3x32xf32, #tpu.memory_space<vmem>>, %arg3: memref<1x32xf32, #tpu.memory_space<vmem>>, %arg4: memref<32x32xf32, #tpu.memory_space<vmem>>, %arg5: memref<1x32xf32, #tpu.memory_space<vmem>>, %arg6: memref<32x3xf32, #tpu.memory_space<vmem>>, %arg7: memref<1x3xf32, #tpu.memory_space<vmem>>, %arg8: memref<8x3xf32, #tpu.memory_space<vmem>>) attributes {dimension_semantics = [#tpu.dimension_semantics<parallel>], iteration_bounds = array<i64: 1>, scalar_prefetch = 0 : i64, scratch_operands = 0 : i64, tpu.core_type = #tpu.core_type<tc>, window_params = [{transform_indices = @transform_0, window_bounds = array<i64: 8, 3>}, {pipeline_mode = #tpu.pipeline_mode<synchronous>, transform_indices = @transform_1, window_bounds = array<i64: 3, 32>}, {pipeline_mode = #tpu.pipeline_mode<synchronous>, transform_indices = @transform_2, window_bounds = array<i64: 1, 32>}, {pipeline_mode = #tpu.pipeline_mode<synchronous>, transform_indices = @transform_3, window_bounds = array<i64: 32, 32>}, {pipeline_mode = #tpu.pipeline_mode<synchronous>, transform_indices = @transform_4, window_bounds = array<i64: 1, 32>}, {pipeline_mode = #tpu.pipeline_mode<synchronous>, transform_indices = @transform_5, window_bounds = array<i64: 32, 3>}, {pipeline_mode = #tpu.pipeline_mode<synchronous>, transform_indices = @transform_6, window_bounds = array<i64: 1, 3>}, {transform_indices = @transform_7, window_bounds = array<i64: 8, 3>}]} {
    %c0 = arith.constant 0 : index
    %c0_0 = arith.constant 0 : index
    %0 = vector.load %arg2[%c0, %c0_0] : memref<3x32xf32, #tpu.memory_space<vmem>>, vector<3x32xf32>
    %c0_1 = arith.constant 0 : index
    %c0_2 = arith.constant 0 : index
    %1 = vector.load %arg3[%c0_1, %c0_2] : memref<1x32xf32, #tpu.memory_space<vmem>>, vector<1x32xf32>
    %c0_3 = arith.constant 0 : index
    %c0_4 = arith.constant 0 : index
    %2 = vector.load %arg4[%c0_3, %c0_4] : memref<32x32xf32, #tpu.memory_space<vmem>>, vector<32x32xf32>
    %c0_5 = arith.constant 0 : index
    %c0_6 = arith.constant 0 : index
    %3 = vector.load %arg5[%c0_5, %c0_6] : memref<1x32xf32, #tpu.memory_space<vmem>>, vector<1x32xf32>
    %c0_7 = arith.constant 0 : index
    %c0_8 = arith.constant 0 : index
    %4 = vector.load %arg6[%c0_7, %c0_8] : memref<32x3xf32, #tpu.memory_space<vmem>>, vector<32x3xf32>
    %c0_9 = arith.constant 0 : index
    %c0_10 = arith.constant 0 : index
    %5 = vector.load %arg7[%c0_9, %c0_10] : memref<1x3xf32, #tpu.memory_space<vmem>>, vector<1x3xf32>
    %c0_i32 = arith.constant 0 : i32
    %c8_i32 = arith.constant 8 : i32
    %6 = arith.muli %c0_i32, %c8_i32 : i32
    %7 = tpu.assume_multiple %6, 8 : i32
    %8 = arith.index_cast %7 : i32 to index
    %c0_11 = arith.constant 0 : index
    %9 = vector.load %arg1[%8, %c0_11] : memref<8x3xf32, #tpu.memory_space<vmem>>, vector<8x3xf32>
    %10 = vector.extract_strided_slice %9 {offsets = [0, 0], sizes = [8, 1], strides = [1, 1]} : vector<8x3xf32> to vector<8x1xf32>
    %11 = vector.extract_strided_slice %0 {offsets = [0, 0], sizes = [1, 32], strides = [1, 1]} : vector<3x32xf32> to vector<1x32xf32>
    %12 = vector.broadcast %10 : vector<8x1xf32> to vector<8x32xf32>
    %13 = vector.broadcast %11 : vector<1x32xf32> to vector<8x32xf32>
    %14 = arith.mulf %12, %13 : vector<8x32xf32>
    %15 = vector.extract_strided_slice %9 {offsets = [0, 1], sizes = [8, 1], strides = [1, 1]} : vector<8x3xf32> to vector<8x1xf32>
    %16 = vector.extract_strided_slice %0 {offsets = [1, 0], sizes = [1, 32], strides = [1, 1]} : vector<3x32xf32> to vector<1x32xf32>
    %17 = vector.broadcast %15 : vector<8x1xf32> to vector<8x32xf32>
    %18 = vector.broadcast %16 : vector<1x32xf32> to vector<8x32xf32>
    %19 = arith.mulf %17, %18 : vector<8x32xf32>
    %20 = arith.addf %14, %19 : vector<8x32xf32>
    %21 = vector.extract_strided_slice %9 {offsets = [0, 2], sizes = [8, 1], strides = [1, 1]} : vector<8x3xf32> to vector<8x1xf32>
    %22 = vector.extract_strided_slice %0 {offsets = [2, 0], sizes = [1, 32], strides = [1, 1]} : vector<3x32xf32> to vector<1x32xf32>
    %23 = vector.broadcast %21 : vector<8x1xf32> to vector<8x32xf32>
    %24 = vector.broadcast %22 : vector<1x32xf32> to vector<8x32xf32>
    %25 = arith.mulf %23, %24 : vector<8x32xf32>
    %26 = arith.addf %20, %25 : vector<8x32xf32>
    %27 = vector.broadcast %1 : vector<1x32xf32> to vector<8x32xf32>
    %28 = arith.addf %26, %27 : vector<8x32xf32>
    %cst = arith.constant 0.000000e+00 : f32
    %29 = vector.broadcast %cst : f32 to vector<8x32xf32>
    %30 = arith.maximumf %28, %29 : vector<8x32xf32>
    %cst_12 = arith.constant dense<0.000000e+00> : vector<8x32xf32>
    %31 = tpu.matmul %30, %2, %cst_12 {dimension_numbers = #tpu.dot_dimension_numbers<[1], [0], [0], [1], [0, 0, 1, 1], [], []>} : vector<8x32xf32>, vector<32x32xf32>, vector<8x32xf32> -> vector<8x32xf32>
    %32 = vector.broadcast %3 : vector<1x32xf32> to vector<8x32xf32>
    %33 = arith.addf %31, %32 : vector<8x32xf32>
    %cst_13 = arith.constant 0.000000e+00 : f32
    %34 = vector.broadcast %cst_13 : f32 to vector<8x32xf32>
    %35 = arith.maximumf %33, %34 : vector<8x32xf32>
    %cst_14 = arith.constant dense<0.000000e+00> : vector<8x3xf32>
    %36 = tpu.matmul %35, %4, %cst_14 {dimension_numbers = #tpu.dot_dimension_numbers<[1], [0], [0], [1], [0, 0, 1, 1], [], []>} : vector<8x32xf32>, vector<32x3xf32>, vector<8x3xf32> -> vector<8x3xf32>
    %37 = vector.broadcast %5 : vector<1x3xf32> to vector<8x3xf32>
    %38 = arith.addf %36, %37 : vector<8x3xf32>
    %39 = arith.index_cast %7 : i32 to index
    %c0_15 = arith.constant 0 : index
    %40 = vector.load %arg8[%39, %c0_15] : memref<8x3xf32, #tpu.memory_space<vmem>>, vector<8x3xf32>
    tpu.vector_store %arg8[%39, %c0_15], %38 {strides = array<i32>} : memref<8x3xf32, #tpu.memory_space<vmem>>, vector<8x3xf32>,
    %c1_i32 = arith.constant 1 : i32
    return
  }
  func.func @transform_0(%arg0: i32) -> (i32, i32) {
    %c0_i32 = arith.constant 0 : i32
    %c0_i32_0 = arith.constant 0 : i32
    return %arg0, %c0_i32 : i32, i32
  }
  func.func @transform_1(%arg0: i32) -> (i32, i32) {
    %c0_i32 = arith.constant 0 : i32
    %c0_i32_0 = arith.constant 0 : i32
    %c0_i32_1 = arith.constant 0 : i32
    return %c0_i32, %c0_i32_0 : i32, i32
  }
  func.func @transform_2(%arg0: i32) -> (i32, i32) {
    %c0_i32 = arith.constant 0 : i32
    %c0_i32_0 = arith.constant 0 : i32
    %c0_i32_1 = arith.constant 0 : i32
    return %c0_i32, %c0_i32_0 : i32, i32
  }
  func.func @transform_3(%arg0: i32) -> (i32, i32) {
    %c0_i32 = arith.constant 0 : i32
    %c0_i32_0 = arith.constant 0 : i32
    %c0_i32_1 = arith.constant 0 : i32
    return %c0_i32, %c0_i32_0 : i32, i32
  }
  func.func @transform_4(%arg0: i32) -> (i32, i32) {
    %c0_i32 = arith.constant 0 : i32
    %c0_i32_0 = arith.constant 0 : i32
    %c0_i32_1 = arith.constant 0 : i32
    return %c0_i32, %c0_i32_0 : i32, i32
  }
  func.func @transform_5(%arg0: i32) -> (i32, i32) {
    %c0_i32 = arith.constant 0 : i32
    %c0_i32_0 = arith.constant 0 : i32
    %c0_i32_1 = arith.constant 0 : i32
    return %c0_i32, %c0_i32_0 : i32, i32
  }
  func.func @transform_6(%arg0: i32) -> (i32, i32) {
    %c0_i32 = arith.constant 0 : i32
    %c0_i32_0 = arith.constant 0 : i32
    %c0_i32_1 = arith.constant 0 : i32
    return %c0_i32, %c0_i32_0 : i32, i32
  }
  func.func @transform_7(%arg0: i32) -> (i32, i32) {
    %c0_i32 = arith.constant 0 : i32
    %c0_i32_0 = arith.constant 0 : i32
    return %arg0, %c0_i32 : i32, i32
  }
}

</mosaic_0001>

<llo_original>
// kernel: simple_model_forward.1
$region0: #{simple_model_forward.1}
  #allocation0 [shape = 'u32[]', space=smem, size = 0x4, offset = 0x4, fixed_abs, tag = 'smem constant byte address 0x4 - core index']
  #allocation1 [shape = 'u32[144,128]{1,0:T(1,128)}', space=vmem, size = 0x12000, scoped, tag = 'internal scratch']
  %s0 = inlined_call_operand.vmem [shape: f32[8,3], index: 0, kind: input, shape index: {}]
  %s1 = inlined_call_operand.vmem [shape: f32[3,32], index: 1, kind: input, shape index: {}]
  %s2 = inlined_call_operand.vmem [shape: f32[1,32], index: 2, kind: input, shape index: {}]
  %s3 = inlined_call_operand.vmem [shape: f32[32,32], index: 3, kind: input, shape index: {}]
  %s4 = inlined_call_operand.vmem [shape: f32[1,32], index: 4, kind: input, shape index: {}]
  %s5 = inlined_call_operand.vmem [shape: f32[32,3], index: 5, kind: input, shape index: {}]
  %s6 = inlined_call_operand.vmem [shape: f32[1,3], index: 6, kind: input, shape index: {}]
  %s7 = inlined_call_operand.vmem [shape: f32[8,3], index: 7, kind: output, shape index: {}]
  %s8 = sld [smem:[#allocation0]]
  $region38: #{simple_model_forward.1} parent=0
    _
  %s10 = ssub.s32 1, %s8
  %s11 = scalar_select 0, %s10, %s8
  // Predicated region
  $region2: #{simple_model_forward.1} parent=0 // pred_check
    _
  $region3: #{simple_model_forward.1} parent=0 // pred_check_branch
    %13 = sbr.rel (0) target = $region5
  $region4: #{simple_model_forward.1} parent=0 // pred_region
    _
  $region5: #{simple_model_forward.1} parent=0 // pred_fallthru
    _
  // Predicated region
  $region6: #{simple_model_forward.1} parent=0 // pred_check
    _
  $region7: #{simple_model_forward.1} parent=0 // pred_check_branch
    %15 = sbr.rel (0) target = $region9
  $region8: #{simple_model_forward.1} parent=0 // pred_region
    _
  $region9: #{simple_model_forward.1} parent=0 // pred_fallthru
    _
  // Predicated region
  $region10: #{simple_model_forward.1} parent=0 // pred_check
    _
  $region11: #{simple_model_forward.1} parent=0 // pred_check_branch
    %17 = sbr.rel (0) target = $region13
  $region12: #{simple_model_forward.1} parent=0 // pred_region
    _
  $region13: #{simple_model_forward.1} parent=0 // pred_fallthru
    _
  // Predicated region
  $region14: #{simple_model_forward.1} parent=0 // pred_check
    _
  $region15: #{simple_model_forward.1} parent=0 // pred_check_branch
    %19 = sbr.rel (0) target = $region17
  $region16: #{simple_model_forward.1} parent=0 // pred_region
    _
  $region17: #{simple_model_forward.1} parent=0 // pred_fallthru
    _
  // Predicated region
  $region18: #{simple_model_forward.1} parent=0 // pred_check
    _
  $region19: #{simple_model_forward.1} parent=0 // pred_check_branch
    %21 = sbr.rel (0) target = $region21
  $region20: #{simple_model_forward.1} parent=0 // pred_region
    _
  $region21: #{simple_model_forward.1} parent=0 // pred_fallthru
    _
  // Predicated region
  $region22: #{simple_model_forward.1} parent=0 // pred_check
    _
  $region23: #{simple_model_forward.1} parent=0 // pred_check_branch
    %23 = sbr.rel (0) target = $region25
  $region24: #{simple_model_forward.1} parent=0 // pred_region
    _
  $region25: #{simple_model_forward.1} parent=0 // pred_fallthru
    _
  // Predicated region
  $region26: #{simple_model_forward.1} parent=0 // pred_check
    _
  $region27: #{simple_model_forward.1} parent=0 // pred_check_branch
    %25 = sbr.rel (0) target = $region29
  $region28: #{simple_model_forward.1} parent=0 // pred_region
    _
  $region29: #{simple_model_forward.1} parent=0 // pred_fallthru
    _
  %v26 = vld [vmem:[%s1] sm:$0x7]
  %v27 = vld [vmem:[%s2] sm:$0x1]
  %v28 = vld [vmem:[%s3] sm:$0xff]
  %v29 = vld [vmem:[%s3 + $0x8] sm:$0xff]
  %v30 = vld [vmem:[%s3 + $0x10] sm:$0xff]
  %v31 = vld [vmem:[%s3 + $0x18] sm:$0xff]
  %v32 = vld [vmem:[%s4] sm:$0x1]
  %v33 = vld [vmem:[%s5] sm:$0xff]
  %v34 = vld [vmem:[%s5 + $0x8] sm:$0xff]
  %v35 = vld [vmem:[%s5 + $0x10] sm:$0xff]
  %v36 = vld [vmem:[%s5 + $0x18] sm:$0xff]
  %v37 = vld [vmem:[%s6] sm:$0x1]
  %v38 = vld [vmem:[%s0] sm:$0xff]
  %40 = vset.pattern.permute.xlu0 0
  %41 = vperm.xlu0 %40, %v38
  %v42 = vpop.permute.xlu0 %41
  %v44 = vlaneseq
  %v45 = vshrl.u32 %v44, 7
  %v46 = vsub.s32 0, %v45
  %v47 = vrot.slane %v26, %v46
  %v48 = vmul.f32 %v42, %v47
  %49 = vset.pattern.permute.xlu0 1
  %50 = vperm.xlu0 %49, %v38
  %v51 = vpop.permute.xlu0 %50
  %v53 = vlaneseq
  %v54 = vshrl.u32 %v53, 7
  %v55 = vsub.s32 1, %v54
  %v56 = vrot.slane %v26, %v55
  %v57 = vmul.f32 %v51, %v56
  %v58 = vadd.f32 %v48, %v57
  %59 = vset.pattern.permute.xlu0 2
  %60 = vperm.xlu0 %59, %v38
  %v61 = vpop.permute.xlu0 %60
  %v63 = vlaneseq
  %v64 = vshrl.u32 %v63, 7
  %v65 = vsub.s32 2, %v64
  %v66 = vrot.slane %v26, %v65
  %v67 = vmul.f32 %v61, %v66
  %v68 = vadd.f32 %v58, %v67
  %v70 = vlaneseq
  %v71 = vshrl.u32 %v70, 7
  %v72 = vsub.s32 0, %v71
  %v73 = vrot.slane %v27, %v72
  %v75 = vadd.f32 %v68, %v73
  %v76 = vmax.f32 %v75, 0.0
  %v78 = vlaneseq
  %v79 = vshrl.u32 %v78, 7
  %v80 = vsub.s32 0, %v79
  %v81 = vrot.slane %v32, %v80
  %vm83 = vcmask 261120
  %v85 = vsel %vm83, %v76, 0
  %87 = vmatprep.subr.mxu0 0.0
  %88 = vmatpush1.msra.mxu0 0.0
  %89 = vmatprep.subr.mxu0 0.0
  %90 = vmatpush1.msra.mxu0 0.0
  %91 = vmatprep.subr.mxu0 0.0
  %92 = vmatpush1.msra.mxu0 0.0
  %93 = vmatprep.subr.mxu0 0.0
  %94 = vmatpush1.msra.mxu0 0.0
  %95 = vmatprep.subr.mxu0 0.0
  %96 = vmatpush1.msra.mxu0 0.0
  %97 = vmatprep.subr.mxu0 0.0
  %98 = vmatpush1.msra.mxu0 0.0
  %99 = vmatprep.subr.mxu0 0.0
  %100 = vmatpush1.msra.mxu0 0.0
  %101 = vmatprep.subr.mxu0 0.0
  %102 = vmatpush1.msra.mxu0 0.0
  %103 = vmatprep.subr.mxu0 0.0
  %104 = vmatpush1.msra.mxu0 0.0
  %105 = vmatprep.subr.mxu0 0.0
  %106 = vmatpush1.msra.mxu0 0.0
  %107 = vmatprep.subr.mxu0 0.0
  %108 = vmatpush1.msra.mxu0 0.0
  %109 = vmatprep.subr.mxu0 0.0
  %110 = vmatpush1.msra.mxu0 0.0
  %111 = vmatprep.subr.mxu0 0.0
  %112 = vmatpush1.msra.mxu0 %v31
  %113 = vmatprep.subr.mxu0 0.0
  %114 = vmatpush1.msra.mxu0 %v30
  %115 = vmatprep.subr.mxu0 0.0
  %116 = vmatpush1.msra.mxu0 %v29
  %117 = vmatprep.subr.mxu0 0.0
  %118 = vmatpush1.msra.mxu0 %v28
  %119 = vmatprep.subr.mxu0 0.0
  %120 = vmatpush2.msra.mxu0 0.0
  %121 = vmatprep.subr.mxu0 0.0
  %122 = vmatpush2.msra.mxu0 0.0
  %123 = vmatprep.subr.mxu0 0.0
  %124 = vmatpush2.msra.mxu0 0.0
  %125 = vmatprep.subr.mxu0 0.0
  %126 = vmatpush2.msra.mxu0 0.0
  %127 = vmatprep.subr.mxu0 0.0
  %128 = vmatpush2.msra.mxu0 0.0
  %129 = vmatprep.subr.mxu0 0.0
  %130 = vmatpush2.msra.mxu0 0.0
  %131 = vmatprep.subr.mxu0 0.0
  %132 = vmatpush2.msra.mxu0 0.0
  %133 = vmatprep.subr.mxu0 0.0
  %134 = vmatpush2.msra.mxu0 0.0
  %135 = vmatprep.subr.mxu0 0.0
  %136 = vmatpush2.msra.mxu0 0.0
  %137 = vmatprep.subr.mxu0 0.0
  %138 = vmatpush2.msra.mxu0 0.0
  %139 = vmatprep.subr.mxu0 0.0
  %140 = vmatpush2.msra.mxu0 0.0
  %141 = vmatprep.subr.mxu0 0.0
  %142 = vmatpush2.msra.mxu0 0.0
  %143 = vmatprep.subr.mxu0 0.0
  %144 = vmatpush2.msra.mxu0 0.0
  %145 = vmatprep.subr.mxu0 0.0
  %146 = vmatpush2.msra.mxu0 0.0
  %147 = vmatprep.subr.mxu0 0.0
  %148 = vmatpush2.msra.mxu0 0.0
  %149 = vmatprep.subr.mxu0 0.0
  %150 = vmatpush2.msra.mxu0 0.0
  %151 = vmatprep.mubr.f32.mxu0 0.0
  %152 = vmatmul.mubr.f32.gmra.mxu0 %v85
  %v153 = vpop.f32.mrf.mxu0
  %v154 = vadd.f32 %v81, %v153
  %v155 = vpop.f32.mrf.mxu0
  %156 = vdwg.mxu0
  %v157 = vmax.f32 %v154, 0.0
  %v159 = vlaneseq
  %v160 = vshrl.u32 %v159, 7
  %v161 = vsub.s32 0, %v160
  %v162 = vrot.slane %v37, %v161
  %v165 = vsel %vm83, %v157, 0
  %167 = vmatprep.subr.mxu0 0.0
  %168 = vmatpush1.msra.mxu0 0.0
  %169 = vmatprep.subr.mxu0 0.0
  %170 = vmatpush1.msra.mxu0 0.0
  %171 = vmatprep.subr.mxu0 0.0
  %172 = vmatpush1.msra.mxu0 0.0
  %173 = vmatprep.subr.mxu0 0.0
  %174 = vmatpush1.msra.mxu0 0.0
  %175 = vmatprep.subr.mxu0 0.0
  %176 = vmatpush1.msra.mxu0 0.0
  %177 = vmatprep.subr.mxu0 0.0
  %178 = vmatpush1.msra.mxu0 0.0
  %179 = vmatprep.subr.mxu0 0.0
  %180 = vmatpush1.msra.mxu0 0.0
  %181 = vmatprep.subr.mxu0 0.0
  %182 = vmatpush1.msra.mxu0 0.0
  %183 = vmatprep.subr.mxu0 0.0
  %184 = vmatpush1.msra.mxu0 0.0
  %185 = vmatprep.subr.mxu0 0.0
  %186 = vmatpush1.msra.mxu0 0.0
  %187 = vmatprep.subr.mxu0 0.0
  %188 = vmatpush1.msra.mxu0 0.0
  %189 = vmatprep.subr.mxu0 0.0
  %190 = vmatpush1.msra.mxu0 0.0
  %191 = vmatprep.subr.mxu0 0.0
  %192 = vmatpush1.msra.mxu0 %v36
  %193 = vmatprep.subr.mxu0 0.0
  %194 = vmatpush1.msra.mxu0 %v35
  %195 = vmatprep.subr.mxu0 0.0
  %196 = vmatpush1.msra.mxu0 %v34
  %197 = vmatprep.subr.mxu0 0.0
  %198 = vmatpush1.msra.mxu0 %v33
  %199 = vmatprep.subr.mxu0 0.0
  %200 = vmatpush2.msra.mxu0 0.0
  %201 = vmatprep.subr.mxu0 0.0
  %202 = vmatpush2.msra.mxu0 0.0
  %203 = vmatprep.subr.mxu0 0.0
  %204 = vmatpush2.msra.mxu0 0.0
  %205 = vmatprep.subr.mxu0 0.0
  %206 = vmatpush2.msra.mxu0 0.0
  %207 = vmatprep.subr.mxu0 0.0
  %208 = vmatpush2.msra.mxu0 0.0
  %209 = vmatprep.subr.mxu0 0.0
  %210 = vmatpush2.msra.mxu0 0.0
  %211 = vmatprep.subr.mxu0 0.0
  %212 = vmatpush2.msra.mxu0 0.0
  %213 = vmatprep.subr.mxu0 0.0
  %214 = vmatpush2.msra.mxu0 0.0
  %215 = vmatprep.subr.mxu0 0.0
  %216 = vmatpush2.msra.mxu0 0.0
  %217 = vmatprep.subr.mxu0 0.0
  %218 = vmatpush2.msra.mxu0 0.0
  %219 = vmatprep.subr.mxu0 0.0
  %220 = vmatpush2.msra.mxu0 0.0
  %221 = vmatprep.subr.mxu0 0.0
  %222 = vmatpush2.msra.mxu0 0.0
  %223 = vmatprep.subr.mxu0 0.0
  %224 = vmatpush2.msra.mxu0 0.0
  %225 = vmatprep.subr.mxu0 0.0
  %226 = vmatpush2.msra.mxu0 0.0
  %227 = vmatprep.subr.mxu0 0.0
  %228 = vmatpush2.msra.mxu0 0.0
  %229 = vmatprep.subr.mxu0 0.0
  %230 = vmatpush2.msra.mxu0 0.0
  %231 = vmatprep.mubr.f32.mxu0 0.0
  %232 = vmatmul.mubr.f32.gmra.mxu0 %v165
  %v233 = vpop.f32.mrf.mxu0
  %v234 = vadd.f32 %v162, %v233
  %v235 = vpop.f32.mrf.mxu0
  %236 = vdwg.mxu0
  %vm237 = vcmask 23552
  %238 = vst.msk [vmem:[%s7] sm:$0xff] %vm237, %v234
  // Predicated region
  $region30: #{simple_model_forward.1} parent=0 // pred_check
    _
  $region31: #{simple_model_forward.1} parent=0 // pred_check_branch
    %240 = sbr.rel (0) target = $region33
  $region32: #{simple_model_forward.1} parent=0 // pred_region
    _
  $region33: #{simple_model_forward.1} parent=0 // pred_fallthru
    _
  // Predicated region
  $region34: #{simple_model_forward.1} parent=0 // pred_check
    _
  $region35: #{simple_model_forward.1} parent=0 // pred_check_branch
    %242 = sbr.rel (0) target = $region37
  $region36: #{simple_model_forward.1} parent=0 // pred_region
    _
  $region37: #{simple_model_forward.1} parent=0 // pred_fallthru
    _

</llo_original>
